<compile_context>
chip_gen: v5e
topology: v5e:2x2
jax: 0.10.0
libtpu: 0.0.40
codegen_flags: <defaults>
</compile_context>

<pallas_src>
import jax
import jax.numpy as jnp
from jax.experimental import pallas as pl
from jax.experimental.pallas import tpu as pltpu


# ----------------------------- Pallas kernel --------------------------------
def nonlocal_kernel(xq_ref, phi_ref, g_ref,
                    wt_ref, bt_ref,
                    ww_ref, bw_ref,
                    o_ref,
                    m_sc, l_sc, acc_sc, th_sc):
    # xq_ref : (1, TQ, C)    query tile (flat row-major over H*W), f32
    # phi_ref: (1, Ci, TNS)  pooled key projection tile, bf16
    # g_ref  : (1, TNS, Ci)  pooled value projection tile, bf16
    kv = pl.program_id(2)
    nkv = pl.num_programs(2)

    @pl.when(kv == 0)
    def _init():
        m_sc[...] = jnp.full_like(m_sc, -jnp.inf)
        l_sc[...] = jnp.zeros_like(l_sc)
        acc_sc[...] = jnp.zeros_like(acc_sc)
        # theta = 1x1 conv (C -> Ci) on the query tile; cached across kv steps.
        xq_b = xq_ref[0].astype(jnp.bfloat16)
        th = jnp.dot(xq_b, wt_ref[...],
                     preferred_element_type=jnp.float32) + bt_ref[...]
        th_sc[...] = th.astype(jnp.bfloat16)

    # f = theta @ phi : canonical (TQ,Ci)@(Ci,TNS) MXU matmul, lane-dense TNS.
    f = jnp.dot(th_sc[...], phi_ref[0],
                preferred_element_type=jnp.float32)            # (TQ, TNS) f32

    # Online softmax update (flash-style) over the Ns axis.
    m_prev = m_sc[...]
    m_new = jnp.maximum(m_prev, jnp.max(f, axis=-1, keepdims=True))
    alpha = jnp.exp(m_prev - m_new)                            # (TQ, 1)
    p = jnp.exp(f - m_new)                                     # f32 exp (v5e-safe)
    p_b = p.astype(jnp.bfloat16)
    # Accumulate the denominator from the same bf16 p used in the matmul.
    l_sc[...] = alpha * l_sc[...] + jnp.sum(p_b.astype(jnp.float32),
                                            axis=-1, keepdims=True)
    acc_sc[...] = alpha * acc_sc[...] + jnp.dot(
        p_b, g_ref[0], preferred_element_type=jnp.float32)     # (TQ, Ci)
    m_sc[...] = m_new

    @pl.when(kv == nkv - 1)
    def _finalize():
        # Softmax normalization folded into y via the EUP reciprocal.
        y = acc_sc[...] * pl.reciprocal(l_sc[...], approx=True)   # (TQ, Ci)
        # W branch: 1x1 conv (Ci -> C) with eval-mode BN folded in, + residual.
        wy = jnp.dot(y.astype(jnp.bfloat16), ww_ref[...],
                     preferred_element_type=jnp.float32) + bw_ref[...]
        o_ref[0] = (wy + xq_ref[0]).astype(o_ref.dtype)


# ------------------------------- wrapper -------------------------------------
def nonlocal_block(x_nhwc, params, *, tq=256, tns=None):
    B, H, W, C = x_nhwc.shape
    Ci = params["wt"].shape[1]
    N = H * W
    Ns = (H // 2) * (W // 2)

    tq = min(tq, N)
    assert N % tq == 0 and tq % 8 == 0, "tq must divide N and be a multiple of 8"
    nq = N // tq

    if tns is None or tns >= Ns:
        tns = Ns
    else:
        assert Ns % tns == 0 and tns % 128 == 0, \
            "a tiled Ns block must divide Ns and be a multiple of 128"
    nkv = Ns // tns

    x_flat = x_nhwc.reshape(B, N, C)

    # ---- hoisted phi/g projection + 2x2 max-pool (once per batch, in XLA) ----
    wpg = jnp.concatenate([params["wp"], params["wg"]], axis=1)       # (C, 2Ci)
    bpg = jnp.concatenate([params["bp"], params["bg"]], axis=0)       # (2Ci,)
    pg = jnp.einsum('bhwc,ck->bhwk', x_nhwc, wpg) + bpg               # (B,H,W,2Ci) f32
    pg = pg.reshape(B, H // 2, 2, W // 2, 2, 2 * Ci).max(axis=(2, 4)) # pooled
    pg = pg.reshape(B, Ns, 2 * Ci)
    phi = jnp.transpose(pg[..., :Ci], (0, 2, 1)).astype(jnp.bfloat16) # (B, Ci, Ns)
    g = pg[..., Ci:].astype(jnp.bfloat16)                             # (B, Ns, Ci)

    # Fold eval-mode BatchNorm into the W conv; pre-cast MXU weights to bf16.
    eps = 1e-5
    scale = params["gamma"] / jnp.sqrt(params["var"] + eps)              # (C,)
    ww_eff = (params["ww"] * scale[None, :]).astype(jnp.bfloat16)        # (Ci, C)
    bw_eff = ((params["bw"] - params["mean"]) * scale
              + params["beta"]).reshape(1, C)
    wt = params["wt"].astype(jnp.bfloat16)                               # (C, Ci)
    bt = params["bt"].reshape(1, Ci)

    def const_spec(shape):
        n = len(shape)
        return pl.BlockSpec(shape, lambda b, q, k, _n=n: (0,) * _n)

    # ---- generation-aware VMEM budget -----------------------------------------
    # xq/out double-buffered f32 blocks + phi/g bf16 blocks + weights + scratch
    # + two live (tq, tns) f32 score temporaries inside the kernel.
    need_bytes = (2 * tq * C * 4 * 2                    # xq + out (double-buffered)
                  + 2 * (Ci * tns + tns * Ci) * 2       # phi + g blocks (bf16)
                  + (C * Ci + Ci * C) * 2 + (Ci + 3 * C) * 4   # weights/biases
                  + (2 * tq + tq * Ci) * 4 + tq * Ci * 2       # scratch
                  + 2 * tq * tns * 4)                          # f / p temporaries
    try:
        phys_vmem = pltpu.get_tpu_info().vmem_capacity_bytes
    except Exception:
        phys_vmem = 64 * 1024 * 1024          # assume smallest (v7x) if unknown
    vmem_limit = int(min(phys_vmem * 3 // 4,
                         max(32 * 1024 * 1024, need_bytes * 2)))

    cost = pl.CostEstimate(
        flops=int(2 * B * N * Ci * (2 * C + 2 * Ns)),
        transcendentals=int(B * N * Ns),
        bytes_accessed=int(2 * B * N * C * 4 + 2 * B * Ns * 2 * Ci * 2
                           + 2 * C * Ci * 2 + (Ci + 3 * C) * 4),
    )

    out = pl.pallas_call(
        nonlocal_kernel,
        out_shape=jax.ShapeDtypeStruct((B, N, C), x_nhwc.dtype),
        grid_spec=pltpu.PrefetchScalarGridSpec(
            num_scalar_prefetch=0,
            grid=(B, nq, nkv),                       # kv innermost (reduction)
            in_specs=[
                pl.BlockSpec((1, tq, C), lambda b, q, k: (b, q, 0)),     # query tile
                pl.BlockSpec((1, Ci, tns), lambda b, q, k: (b, 0, k)),   # phi tile
                pl.BlockSpec((1, tns, Ci), lambda b, q, k: (b, k, 0)),   # g tile
                const_spec((C, Ci)), const_spec((1, Ci)),                # theta
                const_spec((Ci, C)), const_spec((1, C)),                 # W (+BN)
            ],
            out_specs=pl.BlockSpec((1, tq, C), lambda b, q, k: (b, q, 0)),
            scratch_shapes=[
                pltpu.VMEM((tq, 1), jnp.float32),    # running max
                pltpu.VMEM((tq, 1), jnp.float32),    # running sum
                pltpu.VMEM((tq, Ci), jnp.float32),   # running output acc
                pltpu.VMEM((tq, Ci), jnp.bfloat16),  # cached theta
            ]),
        compiler_params=pltpu.CompilerParams(
            dimension_semantics=("parallel", "parallel", "arbitrary"),
            vmem_limit_bytes=vmem_limit),
        cost_estimate=cost,
    )(x_flat, phi, g, wt, bt, ww_eff, bw_eff)

    return out.reshape(B, H, W, C)


# --------------------------- pure-JAX reference ------------------------------
def ref_forward_nchw(x_nchw, params):
    B, C, H, W = x_nchw.shape
    Ci = params["wt"].shape[1]

    def conv1x1(x, w, b):  # w: (Cin, Cout)
        return jnp.einsum('bchw,co->bohw', x, w) + b[None, :, None, None]

    def maxpool2(x):
        b_, c_, h_, w_ = x.shape
        return x.reshape(b_, c_, h_ // 2, 2, w_ // 2, 2).max(axis=(3, 5))

    g_x = maxpool2(conv1x1(x_nchw, params["wg"], params["bg"]))
    g_x = g_x.reshape(B, Ci, -1).transpose(0, 2, 1)                       # (B, Ns, Ci)
    theta_x = conv1x1(x_nchw, params["wt"], params["bt"]).reshape(B, Ci, -1)
    theta_x = theta_x.transpose(0, 2, 1)                                  # (B, N, Ci)
    phi_x = maxpool2(conv1x1(x_nchw, params["wp"], params["bp"]))
    phi_x = phi_x.reshape(B, Ci, -1)                                      # (B, Ci, Ns)

    f = jnp.matmul(theta_x, phi_x)                                        # (B, N, Ns)
    f_div_C = jax.nn.softmax(f, axis=-1)
    y = jnp.matmul(f_div_C, g_x)                                          # (B, N, Ci)
    y = y.transpose(0, 2, 1).reshape(B, Ci, H, W)

    wy = conv1x1(y, params["ww"], params["bw"])
    eps = 1e-5
    scale = params["gamma"] / jnp.sqrt(params["var"] + eps)
    wy = (wy - params["mean"][None, :, None, None]) * scale[None, :, None, None] \
         + params["beta"][None, :, None, None]
    return wy + x_nchw


# --------------------------------- main ---------------------------------------
def _make_params(key, C, Ci):
    ks = jax.random.split(key, 16)
    return {
        # 1x1 conv weights stored as (Cin, Cout) so the kernel computes x @ w
        "wt": 0.2 * jax.random.normal(ks[1], (C, Ci), dtype=jnp.float32),
        "bt": 0.1 * jax.random.normal(ks[2], (Ci,), dtype=jnp.float32),
        "wp": 0.2 * jax.random.normal(ks[3], (C, Ci), dtype=jnp.float32),
        "bp": 0.1 * jax.random.normal(ks[4], (Ci,), dtype=jnp.float32),
        "wg": 0.2 * jax.random.normal(ks[5], (C, Ci), dtype=jnp.float32),
        "bg": 0.1 * jax.random.normal(ks[6], (Ci,), dtype=jnp.float32),
        "ww": 0.2 * jax.random.normal(ks[7], (Ci, C), dtype=jnp.float32),
        "bw": 0.1 * jax.random.normal(ks[8], (C,), dtype=jnp.float32),
        # BatchNorm2d(C) parameters / running stats (eval mode)
        "gamma": 1.0 + 0.1 * jax.random.normal(ks[9], (C,), dtype=jnp.float32),
        "beta": 0.1 * jax.random.normal(ks[10], (C,), dtype=jnp.float32),
        "mean": 0.1 * jax.random.normal(ks[11], (C,), dtype=jnp.float32),
        "var": 0.5 + jnp.abs(jax.random.normal(ks[12], (C,), dtype=jnp.float32)),
    }


def _check(x_nchw, params, *, tq, tns=None, tag=""):
    x_nhwc = jnp.transpose(x_nchw, (0, 2, 3, 1))
    z_nhwc = nonlocal_block(x_nhwc, params, tq=tq, tns=tns)
    z_nhwc = jax.block_until_ready(z_nhwc)
    z_nchw = jnp.transpose(z_nhwc, (0, 3, 1, 2))
    z_ref = ref_forward_nchw(x_nchw, params)
    assert z_nchw.shape == x_nchw.shape
    max_err = jnp.max(jnp.abs(z_nchw - z_ref))
    # bf16 MXU operands + approx reciprocal -> slightly loosened tolerance vs f32 ref
    assert jnp.allclose(z_nchw, z_ref, atol=3e-2, rtol=3e-2), \
        f"{tag} max abs err = {max_err}"


if __name__ == "__main__":
    key = jax.random.PRNGKey(0)
    k0, k1, k2 = jax.random.split(key, 3)

    # Case 1: module-scale toy shape (B=2, C=4, 16x16); tq=64 exercises nq>1.
    B, C, H, W = 2, 4, 16, 16
    Ci = max(C // 2, 1)
    params = _make_params(k0, C, Ci)
    x1 = jax.random.normal(k1, (B, C, H, W), dtype=jnp.float32)
    _check(x1, params, tq=64, tag="16x16")

    # Case 2: 32x32 spatial with tns=128 exercises the online-softmax kv loop
    # (Ns=256 -> 2 kv tiles) and nq>1 query tiling.
    x2 = jax.random.normal(k2, (B, C, 32, 32), dtype=jnp.float32)
    _check(x2, params, tq=128, tns=128, tag="32x32")

    print("KERNEL_OK")
</pallas_src>

<mosaic_0001>
module attributes {stable_mosaic.version = 11 : i64} {
  func.func @nonlocal_kernel(%arg0: i32, %arg1: i32, %arg2: i32, %arg3: memref<1x64x4xf32, #tpu.memory_space<vmem>>, %arg4: memref<1x2x64xbf16, #tpu.memory_space<vmem>>, %arg5: memref<1x64x2xbf16, #tpu.memory_space<vmem>>, %arg6: memref<4x2xbf16, #tpu.memory_space<vmem>>, %arg7: memref<1x2xf32, #tpu.memory_space<vmem>>, %arg8: memref<2x4xbf16, #tpu.memory_space<vmem>>, %arg9: memref<1x4xf32, #tpu.memory_space<vmem>>, %arg10: memref<1x64x4xf32, #tpu.memory_space<vmem>>, %arg11: memref<64x1xf32, #tpu.memory_space<vmem>>, %arg12: memref<64x1xf32, #tpu.memory_space<vmem>>, %arg13: memref<64x2xf32, #tpu.memory_space<vmem>>, %arg14: memref<64x2xbf16, #tpu.memory_space<vmem>>) attributes {dimension_semantics = [#tpu.dimension_semantics<parallel>, #tpu.dimension_semantics<parallel>, #tpu.dimension_semantics<arbitrary>], iteration_bounds = array<i64: 2, 4, 1>, scalar_prefetch = 0 : i64, scratch_operands = 4 : i64, tpu.core_type = #tpu.core_type<tc>, window_params = [{transform_indices = @transform_0, window_bounds = array<i64: 1, 64, 4>}, {transform_indices = @transform_1, window_bounds = array<i64: 1, 2, 64>}, {transform_indices = @transform_2, window_bounds = array<i64: 1, 64, 2>}, {pipeline_mode = #tpu.pipeline_mode<synchronous>, transform_indices = @transform_3, window_bounds = array<i64: 4, 2>}, {pipeline_mode = #tpu.pipeline_mode<synchronous>, transform_indices = @transform_4, window_bounds = array<i64: 1, 2>}, {pipeline_mode = #tpu.pipeline_mode<synchronous>, transform_indices = @transform_5, window_bounds = array<i64: 2, 4>}, {pipeline_mode = #tpu.pipeline_mode<synchronous>, transform_indices = @transform_6, window_bounds = array<i64: 1, 4>}, {transform_indices = @transform_7, window_bounds = array<i64: 1, 64, 4>}]} {
    %c0_i32 = arith.constant 0 : i32
    %0 = arith.cmpi eq, %arg2, %c0_i32 : i32
    %1 = arith.extui %0 : i1 to i32
    %c0_i32_0 = arith.constant 0 : i32
    %2 = arith.cmpi ne, %1, %c0_i32_0 : i32
    scf.if %2 {
      %cst_25 = arith.constant 0xFF800000 : f32
      %36 = vector.broadcast %cst_25 : f32 to vector<64x1xf32>
      %c0_26 = arith.constant 0 : index
      %c0_27 = arith.constant 0 : index
      %37 = vector.load %arg11[%c0_26, %c0_27] : memref<64x1xf32, #tpu.memory_space<vmem>>, vector<64x1xf32>
      tpu.vector_store %arg11[%c0_26, %c0_27], %36 {strides = array<i32>} : memref<64x1xf32, #tpu.memory_space<vmem>>, vector<64x1xf32>,
      %cst_28 = arith.constant 0.000000e+00 : f32
      %38 = vector.broadcast %cst_28 : f32 to vector<64x1xf32>
      %c0_29 = arith.constant 0 : index
      %c0_30 = arith.constant 0 : index
      %39 = vector.load %arg12[%c0_29, %c0_30] : memref<64x1xf32, #tpu.memory_space<vmem>>, vector<64x1xf32>
      tpu.vector_store %arg12[%c0_29, %c0_30], %38 {strides = array<i32>} : memref<64x1xf32, #tpu.memory_space<vmem>>, vector<64x1xf32>,
      %cst_31 = arith.constant 0.000000e+00 : f32
      %40 = vector.broadcast %cst_31 : f32 to vector<64x2xf32>
      %c0_32 = arith.constant 0 : index
      %c0_33 = arith.constant 0 : index
      %41 = vector.load %arg13[%c0_32, %c0_33] : memref<64x2xf32, #tpu.memory_space<vmem>>, vector<64x2xf32>
      tpu.vector_store %arg13[%c0_32, %c0_33], %40 {strides = array<i32>} : memref<64x2xf32, #tpu.memory_space<vmem>>, vector<64x2xf32>,
      %c0_34 = arith.constant 0 : index
      %c0_35 = arith.constant 0 : index
      %c0_36 = arith.constant 0 : index
      %42 = vector.load %arg3[%c0_34, %c0_35, %c0_36] : memref<1x64x4xf32, #tpu.memory_space<vmem>>, vector<1x64x4xf32>
      %43 = vector.shape_cast %42 : vector<1x64x4xf32> to vector<64x4xf32>
      %44 = arith.truncf %43 : vector<64x4xf32> to vector<64x4xbf16>
      %c0_37 = arith.constant 0 : index
      %c0_38 = arith.constant 0 : index
      %45 = vector.load %arg6[%c0_37, %c0_38] : memref<4x2xbf16, #tpu.memory_space<vmem>>, vector<4x2xbf16>
      %cst_39 = arith.constant dense<0.000000e+00> : vector<64x2xf32>
      %46 = tpu.matmul %44, %45, %cst_39 {dimension_numbers = #tpu.dot_dimension_numbers<[1], [0], [0], [1], [0, 0, 1, 1], [], []>} : vector<64x4xbf16>, vector<4x2xbf16>, vector<64x2xf32> -> vector<64x2xf32>
      %c0_40 = arith.constant 0 : index
      %c0_41 = arith.constant 0 : index
      %47 = vector.load %arg7[%c0_40, %c0_41] : memref<1x2xf32, #tpu.memory_space<vmem>>, vector<1x2xf32>
      %48 = vector.broadcast %47 : vector<1x2xf32> to vector<64x2xf32>
      %49 = arith.addf %46, %48 : vector<64x2xf32>
      %50 = arith.truncf %49 : vector<64x2xf32> to vector<64x2xbf16>
      %c0_42 = arith.constant 0 : index
      %c0_43 = arith.constant 0 : index
      %51 = vector.load %arg14[%c0_42, %c0_43] : memref<64x2xbf16, #tpu.memory_space<vmem>>, vector<64x2xbf16>
      tpu.vector_store %arg14[%c0_42, %c0_43], %50 {strides = array<i32>} : memref<64x2xbf16, #tpu.memory_space<vmem>>, vector<64x2xbf16>,
    } else {
    }
    %c0 = arith.constant 0 : index
    %c0_1 = arith.constant 0 : index
    %3 = vector.load %arg14[%c0, %c0_1] : memref<64x2xbf16, #tpu.memory_space<vmem>>, vector<64x2xbf16>
    %c0_2 = arith.constant 0 : index
    %c0_3 = arith.constant 0 : index
    %c0_4 = arith.constant 0 : index
    %4 = vector.load %arg4[%c0_2, %c0_3, %c0_4] : memref<1x2x64xbf16, #tpu.memory_space<vmem>>, vector<1x2x64xbf16>
    %5 = vector.shape_cast %4 : vector<1x2x64xbf16> to vector<2x64xbf16>
    %cst = arith.constant dense<0.000000e+00> : vector<64x64xf32>
    %6 = tpu.matmul %3, %5, %cst {dimension_numbers = #tpu.dot_dimension_numbers<[1], [0], [0], [1], [0, 0, 1, 1], [], []>} : vector<64x2xbf16>, vector<2x64xbf16>, vector<64x64xf32> -> vector<64x64xf32>
    %c0_5 = arith.constant 0 : index
    %c0_6 = arith.constant 0 : index
    %7 = vector.load %arg11[%c0_5, %c0_6] : memref<64x1xf32, #tpu.memory_space<vmem>>, vector<64x1xf32>
    %cst_7 = arith.constant dense<0xFF800000> : vector<64xf32>
    %8 = vector.multi_reduction <maximumf>, %6, %cst_7 [1] : vector<64x64xf32> to vector<64xf32>
    %9 = vector.shape_cast %8 : vector<64xf32> to vector<64x1xf32>
    %10 = arith.maximumf %7, %9 : vector<64x1xf32>
    %11 = arith.subf %7, %10 : vector<64x1xf32>
    %12 = math.exp %11 : vector<64x1xf32>
    %13 = vector.broadcast %10 : vector<64x1xf32> to vector<64x64xf32>
    %14 = arith.subf %6, %13 : vector<64x64xf32>
    %15 = math.exp %14 : vector<64x64xf32>
    %16 = arith.truncf %15 : vector<64x64xf32> to vector<64x64xbf16>
    %c0_8 = arith.constant 0 : index
    %c0_9 = arith.constant 0 : index
    %17 = vector.load %arg12[%c0_8, %c0_9] : memref<64x1xf32, #tpu.memory_space<vmem>>, vector<64x1xf32>
    %18 = arith.mulf %12, %17 : vector<64x1xf32>
    %19 = arith.extf %16 : vector<64x64xbf16> to vector<64x64xf32>
    %cst_10 = arith.constant dense<0.000000e+00> : vector<64xf32>
    %20 = vector.multi_reduction <add>, %19, %cst_10 [1] : vector<64x64xf32> to vector<64xf32>
    %21 = vector.shape_cast %20 : vector<64xf32> to vector<64x1xf32>
    %22 = arith.addf %18, %21 : vector<64x1xf32>
    %c0_11 = arith.constant 0 : index
    %c0_12 = arith.constant 0 : index
    %23 = vector.load %arg12[%c0_11, %c0_12] : memref<64x1xf32, #tpu.memory_space<vmem>>, vector<64x1xf32>
    tpu.vector_store %arg12[%c0_11, %c0_12], %22 {strides = array<i32>} : memref<64x1xf32, #tpu.memory_space<vmem>>, vector<64x1xf32>,
    %c0_13 = arith.constant 0 : index
    %c0_14 = arith.constant 0 : index
    %24 = vector.load %arg13[%c0_13, %c0_14] : memref<64x2xf32, #tpu.memory_space<vmem>>, vector<64x2xf32>
    %25 = vector.broadcast %12 : vector<64x1xf32> to vector<64x2xf32>
    %26 = arith.mulf %25, %24 : vector<64x2xf32>
    %c0_15 = arith.constant 0 : index
    %c0_16 = arith.constant 0 : index
    %c0_17 = arith.constant 0 : index
    %27 = vector.load %arg5[%c0_15, %c0_16, %c0_17] : memref<1x64x2xbf16, #tpu.memory_space<vmem>>, vector<1x64x2xbf16>
    %28 = vector.shape_cast %27 : vector<1x64x2xbf16> to vector<64x2xbf16>
    %cst_18 = arith.constant dense<0.000000e+00> : vector<64x2xf32>
    %29 = tpu.matmul %16, %28, %cst_18 {dimension_numbers = #tpu.dot_dimension_numbers<[1], [0], [0], [1], [0, 0, 1, 1], [], []>} : vector<64x64xbf16>, vector<64x2xbf16>, vector<64x2xf32> -> vector<64x2xf32>
    %30 = arith.addf %26, %29 : vector<64x2xf32>
    %c0_19 = arith.constant 0 : index
    %c0_20 = arith.constant 0 : index
    %31 = vector.load %arg13[%c0_19, %c0_20] : memref<64x2xf32, #tpu.memory_space<vmem>>, vector<64x2xf32>
    tpu.vector_store %arg13[%c0_19, %c0_20], %30 {strides = array<i32>} : memref<64x2xf32, #tpu.memory_space<vmem>>, vector<64x2xf32>,
    %c0_21 = arith.constant 0 : index
    %c0_22 = arith.constant 0 : index
    %32 = vector.load %arg11[%c0_21, %c0_22] : memref<64x1xf32, #tpu.memory_space<vmem>>, vector<64x1xf32>
    tpu.vector_store %arg11[%c0_21, %c0_22], %10 {strides = array<i32>} : memref<64x1xf32, #tpu.memory_space<vmem>>, vector<64x1xf32>,
    %c0_i32_23 = arith.constant 0 : i32
    %33 = arith.cmpi eq, %arg2, %c0_i32_23 : i32
    %34 = arith.extui %33 : i1 to i32
    %c0_i32_24 = arith.constant 0 : i32
    %35 = arith.cmpi ne, %34, %c0_i32_24 : i32
    scf.if %35 {
      %c0_25 = arith.constant 0 : index
      %c0_26 = arith.constant 0 : index
      %36 = vector.load %arg13[%c0_25, %c0_26] : memref<64x2xf32, #tpu.memory_space<vmem>>, vector<64x2xf32>
      %c0_27 = arith.constant 0 : index
      %c0_28 = arith.constant 0 : index
      %37 = vector.load %arg12[%c0_27, %c0_28] : memref<64x1xf32, #tpu.memory_space<vmem>>, vector<64x1xf32>
      %38 = tpu.reciprocal %37 {approx = true} : vector<64x1xf32> -> vector<64x1xf32>
      %39 = vector.broadcast %38 : vector<64x1xf32> to vector<64x2xf32>
      %40 = arith.mulf %36, %39 : vector<64x2xf32>
      %41 = arith.truncf %40 : vector<64x2xf32> to vector<64x2xbf16>
      %c0_29 = arith.constant 0 : index
      %c0_30 = arith.constant 0 : index
      %42 = vector.load %arg8[%c0_29, %c0_30] : memref<2x4xbf16, #tpu.memory_space<vmem>>, vector<2x4xbf16>
      %cst_31 = arith.constant dense<0.000000e+00> : vector<64x4xf32>
      %43 = tpu.matmul %41, %42, %cst_31 {dimension_numbers = #tpu.dot_dimension_numbers<[1], [0], [0], [1], [0, 0, 1, 1], [], []>} : vector<64x2xbf16>, vector<2x4xbf16>, vector<64x4xf32> -> vector<64x4xf32>
      %c0_32 = arith.constant 0 : index
      %c0_33 = arith.constant 0 : index
      %44 = vector.load %arg9[%c0_32, %c0_33] : memref<1x4xf32, #tpu.memory_space<vmem>>, vector<1x4xf32>
      %45 = vector.broadcast %44 : vector<1x4xf32> to vector<64x4xf32>
      %46 = arith.addf %43, %45 : vector<64x4xf32>
      %c0_34 = arith.constant 0 : index
      %c0_35 = arith.constant 0 : index
      %c0_36 = arith.constant 0 : index
      %47 = vector.load %arg3[%c0_34, %c0_35, %c0_36] : memref<1x64x4xf32, #tpu.memory_space<vmem>>, vector<1x64x4xf32>
      %48 = vector.shape_cast %47 : vector<1x64x4xf32> to vector<64x4xf32>
      %49 = arith.addf %46, %48 : vector<64x4xf32>
      %c0_37 = arith.constant 0 : index
      %c0_38 = arith.constant 0 : index
      %c0_39 = arith.constant 0 : index
      %50 = vector.load %arg10[%c0_37, %c0_38, %c0_39] : memref<1x64x4xf32, #tpu.memory_space<vmem>>, vector<1x64x4xf32>
      %51 = vector.shape_cast %50 : vector<1x64x4xf32> to vector<64x4xf32>
      %52 = vector.shape_cast %49 : vector<64x4xf32> to vector<1x64x4xf32>
      tpu.vector_store %arg10[%c0_37, %c0_38, %c0_39], %52 {strides = array<i32>} : memref<1x64x4xf32, #tpu.memory_space<vmem>>, vector<1x64x4xf32>,
    } else {
    }
    return
  }
  func.func @transform_0(%arg0: i32, %arg1: i32, %arg2: i32) -> (i32, i32, i32) {
    %c0_i32 = arith.constant 0 : i32
    %c0_i32_0 = arith.constant 0 : i32
    return %arg0, %arg1, %c0_i32 : i32, i32, i32
  }
  func.func @transform_1(%arg0: i32, %arg1: i32, %arg2: i32) -> (i32, i32, i32) {
    %c0_i32 = arith.constant 0 : i32
    %c0_i32_0 = arith.constant 0 : i32
    return %arg0, %c0_i32, %arg2 : i32, i32, i32
  }
  func.func @transform_2(%arg0: i32, %arg1: i32, %arg2: i32) -> (i32, i32, i32) {
    %c0_i32 = arith.constant 0 : i32
    %c0_i32_0 = arith.constant 0 : i32
    return %arg0, %arg2, %c0_i32 : i32, i32, i32
  }
  func.func @transform_3(%arg0: i32, %arg1: i32, %arg2: i32) -> (i32, i32) {
    %c0_i32 = arith.constant 0 : i32
    %c0_i32_0 = arith.constant 0 : i32
    %c0_i32_1 = arith.constant 0 : i32
    return %c0_i32, %c0_i32_0 : i32, i32
  }
  func.func @transform_4(%arg0: i32, %arg1: i32, %arg2: i32) -> (i32, i32) {
    %c0_i32 = arith.constant 0 : i32
    %c0_i32_0 = arith.constant 0 : i32
    %c0_i32_1 = arith.constant 0 : i32
    return %c0_i32, %c0_i32_0 : i32, i32
  }
  func.func @transform_5(%arg0: i32, %arg1: i32, %arg2: i32) -> (i32, i32) {
    %c0_i32 = arith.constant 0 : i32
    %c0_i32_0 = arith.constant 0 : i32
    %c0_i32_1 = arith.constant 0 : i32
    return %c0_i32, %c0_i32_0 : i32, i32
  }
  func.func @transform_6(%arg0: i32, %arg1: i32, %arg2: i32) -> (i32, i32) {
    %c0_i32 = arith.constant 0 : i32
    %c0_i32_0 = arith.constant 0 : i32
    %c0_i32_1 = arith.constant 0 : i32
    return %c0_i32, %c0_i32_0 : i32, i32
  }
  func.func @transform_7(%arg0: i32, %arg1: i32, %arg2: i32) -> (i32, i32, i32) {
    %c0_i32 = arith.constant 0 : i32
    %c0_i32_0 = arith.constant 0 : i32
    return %arg0, %arg1, %c0_i32 : i32, i32, i32
  }
}

</mosaic_0001>

<llo_original>
// kernel: tpu_custom_call.1
$region0: #{tpu_custom_call.1}
  #allocation0 [shape = 'u32[]', space=smem, size = 0x4, offset = 0x4, fixed_abs, tag = 'smem constant byte address 0x4 - core index']
  #allocation1 [shape = 'u32[72,128]{1,0:T(1,128)}', space=vmem, size = 0x9000, scoped, tag = 'internal scratch']
  #allocation2 [shape = 'f32[64,1]{1,0:T(8,128)}', space=vmem, size = 0x8000, scoped, tag = 'scratch operand']
  #allocation3 [shape = 'f32[64,1]{1,0:T(8,128)}', space=vmem, size = 0x8000, scoped, tag = 'scratch operand']
  #allocation4 [shape = 'f32[64,2]{1,0:T(8,128)}', space=vmem, size = 0x8000, scoped, tag = 'scratch operand']
  #allocation5 [shape = 'bf16[64,2]{1,0:T(8,128)(2,1)}', space=vmem, size = 0x4000, scoped, tag = 'scratch operand']
  %s0 = inlined_call_operand.vmem [shape: f32[2,256,4], index: 0, kind: input, shape index: {}]
  %s1 = inlined_call_operand.vmem [shape: bf16[2,2,64], index: 1, kind: input, shape index: {}]
  %s2 = inlined_call_operand.vmem [shape: bf16[2,64,2], index: 2, kind: input, shape index: {}]
  %s3 = inlined_call_operand.vmem [shape: bf16[4,2], index: 3, kind: input, shape index: {}]
  %s4 = inlined_call_operand.vmem [shape: f32[1,2], index: 4, kind: input, shape index: {}]
  %s5 = inlined_call_operand.vmem [shape: bf16[2,4], index: 5, kind: input, shape index: {}]
  %s6 = inlined_call_operand.vmem [shape: f32[1,4], index: 6, kind: input, shape index: {}]
  %s7 = inlined_call_operand.vmem [shape: f32[2,256,4], index: 7, kind: output, shape index: {}]
  %s8 = sld [smem:[#allocation0]]
  $region69: #{tpu_custom_call.1} parent=0
    _
  %s10 = ssub.s32 1, %s8
  %s11 = scalar_select 0, %s10, %s8
  loop: start=0, step=1, limit=10
  $region2: #{tpu_custom_call.1} parent=0 // loop_pre_header
    _
  $region3: #{tpu_custom_call.1} parent=0 // loop_header
    %s13 = sphi 0, %s17
    %p14 = scmp.ge.s32.totalorder %s13, 10
    %s20 = sphi 0, %s39
    %s21 = sphi 0, %s35
    %s22 = sphi 0, %s31
    %s23 = sphi 0, %s20
    %s24 = sphi 0, %s21
    %s25 = sphi 0, %s22
    %s26 = sphi 0, %s23
    %s27 = sphi 0, %s24
    %s28 = sphi 0, %s25
    %s44 = sphi 0, %s46
    %s47 = sphi 0, %s44
    %s48 = sphi 0, %s47
    %s64 = sphi 0, %s48
    %s72 = sphi 0, %s74
    %s75 = sphi 0, %s72
    %s76 = sphi 0, %s75
    %s92 = sphi 0, %s76
    %s100 = sphi 0, %s102
    %s103 = sphi 0, %s100
    %s104 = sphi 0, %s103
    %s120 = sphi 0, %s104
    %s124 = sphi 0, %s124
    %s126 = sphi 0, %s124
    %s127 = sphi 0, %s126
    %s141 = sphi 0, %s127
    %s145 = sphi 0, %s145
    %s147 = sphi 0, %s145
    %s148 = sphi 0, %s147
    %s162 = sphi 0, %s148
    %s166 = sphi 0, %s166
    %s168 = sphi 0, %s166
    %s169 = sphi 0, %s168
    %s183 = sphi 0, %s169
    %s187 = sphi 0, %s187
    %s189 = sphi 0, %s187
    %s190 = sphi 0, %s189
    %s204 = sphi 0, %s190
    %s212 = sphi 0, %s214
    %s215 = sphi 0, %s212
    %s216 = sphi 0, %s215
    %s232 = sphi 0, %s216
  $region4: #{tpu_custom_call.1} parent=0 // loop_header_branch
    %16 = sbr.rel (%p14) target = $region8
  $region5: #{tpu_custom_call.1} parent=0 // loop_body
    %s18 = ssub.s32 %s13, 1
    %s19 = ssub.s32 %s13, 2
    %s29 = sadd.s32 1, %s22
    %p30 = scmp.ge.s32.totalorder %s29, 1
    %s31 = scalar_select %p30, 0, %s29
    %s32 = sadd.s32 1, %s21
    %s33 = scalar_select %p30, %s32, %s21
    %p34 = scmp.ge.s32.totalorder %s33, 4
    %s35 = scalar_select %p34, 0, %s33
    %s36 = sadd.s32 1, %s20
    %s37 = scalar_select %p34, %s36, %s20
    %p38 = scmp.ge.s32.totalorder %s37, 2
    %s39 = scalar_select %p38, 0, %s37
    %s40 = ssub.s32 %s20, %s39
    %s41 = ssub.s32 %s21, %s35
    %s42 = sor.u32 %s40, %s41
    %p43 = scmp.eq.s32.totalorder %s42, 0
    %s45 = sadd.s32 %s44, 1
    %s46 = scalar_select %p43, %s44, %s45
    %p49 = pneg %p43
    %p50 = scmp.eq.s32.totalorder %s13, 7
    %p51 = por %p49, %p50
    %p52 = scmp.ne.s32.totalorder %s44, %s47
    %p53 = scmp.eq.s32.totalorder %s13, 0
    %p54 = por %p52, %p53
    %p55 = scmp.ne.s32.totalorder %s44, %s47
    %p56 = scmp.eq.s32.totalorder %s18, 7
    %p57 = por %p55, %p56
    %p58 = scmp.ne.s32.totalorder %s47, %s48
    %p59 = scmp.eq.s32.totalorder %s18, 0
    %p60 = por %p58, %p59
    %p61 = scmp.ne.s32.totalorder %s47, %s48
    %p62 = scmp.eq.s32.totalorder %s19, 7
    %p63 = por %p61, %p62
    %p65 = scmp.ne.s32.totalorder %s48, %s64
    %p66 = scmp.eq.s32.totalorder %s19, 0
    %p67 = por %p65, %p66
    %s68 = ssub.s32 %s20, %s39
    %s69 = ssub.s32 %s22, %s31
    %s70 = sor.u32 %s68, %s69
    %p71 = scmp.eq.s32.totalorder %s70, 0
    %s73 = sadd.s32 %s72, 1
    %s74 = scalar_select %p71, %s72, %s73
    %p77 = pneg %p71
    %p78 = scmp.eq.s32.totalorder %s13, 7
    %p79 = por %p77, %p78
    %p80 = scmp.ne.s32.totalorder %s72, %s75
    %p81 = scmp.eq.s32.totalorder %s13, 0
    %p82 = por %p80, %p81
    %p83 = scmp.ne.s32.totalorder %s72, %s75
    %p84 = scmp.eq.s32.totalorder %s18, 7
    %p85 = por %p83, %p84
    %p86 = scmp.ne.s32.totalorder %s75, %s76
    %p87 = scmp.eq.s32.totalorder %s18, 0
    %p88 = por %p86, %p87
    %p89 = scmp.ne.s32.totalorder %s75, %s76
    %p90 = scmp.eq.s32.totalorder %s19, 7
    %p91 = por %p89, %p90
    %p93 = scmp.ne.s32.totalorder %s76, %s92
    %p94 = scmp.eq.s32.totalorder %s19, 0
    %p95 = por %p93, %p94
    %s96 = ssub.s32 %s20, %s39
    %s97 = ssub.s32 %s22, %s31
    %s98 = sor.u32 %s96, %s97
    %p99 = scmp.eq.s32.totalorder %s98, 0
    %s101 = sadd.s32 %s100, 1
    %s102 = scalar_select %p99, %s100, %s101
    %p105 = pneg %p99
    %p106 = scmp.eq.s32.totalorder %s13, 7
    %p107 = por %p105, %p106
    %p108 = scmp.ne.s32.totalorder %s100, %s103
    %p109 = scmp.eq.s32.totalorder %s13, 0
    %p110 = por %p108, %p109
    %p111 = scmp.ne.s32.totalorder %s100, %s103
    %p112 = scmp.eq.s32.totalorder %s18, 7
    %p113 = por %p111, %p112
    %p114 = scmp.ne.s32.totalorder %s103, %s104
    %p115 = scmp.eq.s32.totalorder %s18, 0
    %p116 = por %p114, %p115
    %p117 = scmp.ne.s32.totalorder %s103, %s104
    %p118 = scmp.eq.s32.totalorder %s19, 7
    %p119 = por %p117, %p118
    %p121 = scmp.ne.s32.totalorder %s104, %s120
    %p122 = scmp.eq.s32.totalorder %s19, 0
    %p123 = por %p121, %p122
    %s125 = sadd.s32 %s124, 1
    %p128 = scmp.eq.s32.totalorder %s13, 7
    %p129 = scmp.ne.s32.totalorder %s124, %s126
    %p130 = scmp.eq.s32.totalorder %s13, 0
    %p131 = por %p129, %p130
    %p132 = scmp.ne.s32.totalorder %s124, %s126
    %p133 = scmp.eq.s32.totalorder %s18, 7
    %p134 = por %p132, %p133
    %p135 = scmp.ne.s32.totalorder %s126, %s127
    %p136 = scmp.eq.s32.totalorder %s18, 0
    %p137 = por %p135, %p136
    %p138 = scmp.ne.s32.totalorder %s126, %s127
    %p139 = scmp.eq.s32.totalorder %s19, 7
    %p140 = por %p138, %p139
    %p142 = scmp.ne.s32.totalorder %s127, %s141
    %p143 = scmp.eq.s32.totalorder %s19, 0
    %p144 = por %p142, %p143
    %s146 = sadd.s32 %s145, 1
    %p149 = scmp.eq.s32.totalorder %s13, 7
    %p150 = scmp.ne.s32.totalorder %s145, %s147
    %p151 = scmp.eq.s32.totalorder %s13, 0
    %p152 = por %p150, %p151
    %p153 = scmp.ne.s32.totalorder %s145, %s147
    %p154 = scmp.eq.s32.totalorder %s18, 7
    %p155 = por %p153, %p154
    %p156 = scmp.ne.s32.totalorder %s147, %s148
    %p157 = scmp.eq.s32.totalorder %s18, 0
    %p158 = por %p156, %p157
    %p159 = scmp.ne.s32.totalorder %s147, %s148
    %p160 = scmp.eq.s32.totalorder %s19, 7
    %p161 = por %p159, %p160
    %p163 = scmp.ne.s32.totalorder %s148, %s162
    %p164 = scmp.eq.s32.totalorder %s19, 0
    %p165 = por %p163, %p164
    %s167 = sadd.s32 %s166, 1
    %p170 = scmp.eq.s32.totalorder %s13, 7
    %p171 = scmp.ne.s32.totalorder %s166, %s168
    %p172 = scmp.eq.s32.totalorder %s13, 0
    %p173 = por %p171, %p172
    %p174 = scmp.ne.s32.totalorder %s166, %s168
    %p175 = scmp.eq.s32.totalorder %s18, 7
    %p176 = por %p174, %p175
    %p177 = scmp.ne.s32.totalorder %s168, %s169
    %p178 = scmp.eq.s32.totalorder %s18, 0
    %p179 = por %p177, %p178
    %p180 = scmp.ne.s32.totalorder %s168, %s169
    %p181 = scmp.eq.s32.totalorder %s19, 7
    %p182 = por %p180, %p181
    %p184 = scmp.ne.s32.totalorder %s169, %s183
    %p185 = scmp.eq.s32.totalorder %s19, 0
    %p186 = por %p184, %p185
    %s188 = sadd.s32 %s187, 1
    %p191 = scmp.eq.s32.totalorder %s13, 7
    %p192 = scmp.ne.s32.totalorder %s187, %s189
    %p193 = scmp.eq.s32.totalorder %s13, 0
    %p194 = por %p192, %p193
    %p195 = scmp.ne.s32.totalorder %s187, %s189
    %p196 = scmp.eq.s32.totalorder %s18, 7
    %p197 = por %p195, %p196
    %p198 = scmp.ne.s32.totalorder %s189, %s190
    %p199 = scmp.eq.s32.totalorder %s18, 0
    %p200 = por %p198, %p199
    %p201 = scmp.ne.s32.totalorder %s189, %s190
    %p202 = scmp.eq.s32.totalorder %s19, 7
    %p203 = por %p201, %p202
    %p205 = scmp.ne.s32.totalorder %s190, %s204
    %p206 = scmp.eq.s32.totalorder %s19, 0
    %p207 = por %p205, %p206
    %s208 = ssub.s32 %s20, %s39
    %s209 = ssub.s32 %s21, %s35
    %s210 = sor.u32 %s208, %s209
    %p211 = scmp.eq.s32.totalorder %s210, 0
    %s213 = sadd.s32 %s212, 1
    %s214 = scalar_select %p211, %s212, %s213
    %p217 = pneg %p211
    %p218 = scmp.eq.s32.totalorder %s13, 7
    %p219 = por %p217, %p218
    %p220 = scmp.ne.s32.totalorder %s212, %s215
    %p221 = scmp.eq.s32.totalorder %s13, 0
    %p222 = por %p220, %p221
    %p223 = scmp.ne.s32.totalorder %s212, %s215
    %p224 = scmp.eq.s32.totalorder %s18, 7
    %p225 = por %p223, %p224
    %p226 = scmp.ne.s32.totalorder %s215, %s216
    %p227 = scmp.eq.s32.totalorder %s18, 0
    %p228 = por %p226, %p227
    %p229 = scmp.ne.s32.totalorder %s215, %s216
    %p230 = scmp.eq.s32.totalorder %s19, 7
    %p231 = por %p229, %p230
    %p233 = scmp.ne.s32.totalorder %s216, %s232
    %p234 = scmp.eq.s32.totalorder %s19, 0
    %p235 = por %p233, %p234
    %p236 = scmp.le.s32.totalorder 1, %s13
    %p237 = scmp.lt.s32.totalorder %s13, 9
    %p238 = pnand %p236, %p237
    %p239 = pneg %p238
    // Predicated region
    $region9: #{tpu_custom_call.1} parent=5 // pred_check
      _
    $region10: #{tpu_custom_call.1} parent=5 // pred_check_branch
      %241 = sbr.rel (%p238) target = $region12
    $region11: #{tpu_custom_call.1} parent=5 // pred_region
      %s242 = ssub.s32 %s13, 1
      // Predicated region
      $region13: #{tpu_custom_call.1} parent=11 // pred_check
        %p243 = pneg %p137
      $region14: #{tpu_custom_call.1} parent=11 // pred_check_branch
        %245 = sbr.rel (%p243) target = $region16
      $region15: #{tpu_custom_call.1} parent=11 // pred_region
        _
      $region16: #{tpu_custom_call.1} parent=11 // pred_fallthru
        _
      // Predicated region
      $region17: #{tpu_custom_call.1} parent=11 // pred_check
        %p246 = pneg %p158
      $region18: #{tpu_custom_call.1} parent=11 // pred_check_branch
        %248 = sbr.rel (%p246) target = $region20
      $region19: #{tpu_custom_call.1} parent=11 // pred_region
        _
      $region20: #{tpu_custom_call.1} parent=11 // pred_fallthru
        _
      // Predicated region
      $region21: #{tpu_custom_call.1} parent=11 // pred_check
        %p249 = pneg %p179
      $region22: #{tpu_custom_call.1} parent=11 // pred_check_branch
        %251 = sbr.rel (%p249) target = $region24
      $region23: #{tpu_custom_call.1} parent=11 // pred_region
        _
      $region24: #{tpu_custom_call.1} parent=11 // pred_fallthru
        _
      // Predicated region
      $region25: #{tpu_custom_call.1} parent=11 // pred_check
        %p252 = pneg %p200
      $region26: #{tpu_custom_call.1} parent=11 // pred_check_branch
        %254 = sbr.rel (%p252) target = $region28
      $region27: #{tpu_custom_call.1} parent=11 // pred_region
        _
      $region28: #{tpu_custom_call.1} parent=11 // pred_fallthru
        _
    $region12: #{tpu_custom_call.1} parent=5 // pred_fallthru
      _
    %p255 = scmp.lt.s32.totalorder %s13, 8
    // Predicated region
    $region29: #{tpu_custom_call.1} parent=5 // pred_check
      %p256 = pneg %p255
    $region30: #{tpu_custom_call.1} parent=5 // pred_check_branch
      %258 = sbr.rel (%p256) target = $region32
    $region31: #{tpu_custom_call.1} parent=5 // pred_region
      // Predicated region
      $region33: #{tpu_custom_call.1} parent=31 // pred_check
        %p259 = pneg %p54
      $region34: #{tpu_custom_call.1} parent=31 // pred_check_branch
        %261 = sbr.rel (%p259) target = $region36
      $region35: #{tpu_custom_call.1} parent=31 // pred_region
        %s262 = smul.u32 8, %s21
        %p263 = scmp.lt.s32.totalorder %s20, 1
        %s264 = scalar_select %p263, %s20, 1
        %p265 = scmp.lt.s32.totalorder %s262, 31
        %s266 = scalar_select %p265, %s262, 31
        %s267 = smul.addr %s264, 32
        %s268 = sadd.s32 %s266, %s267
        %s269 = smul.addr %s268, 8
        %s270 = scalar_lea.vmem %s0, %s269
        %s271 = smul.u32 8, %s21
      $region36: #{tpu_custom_call.1} parent=31 // pred_fallthru
        _
      // Predicated region
      $region37: #{tpu_custom_call.1} parent=31 // pred_check
        %p272 = pneg %p82
      $region38: #{tpu_custom_call.1} parent=31 // pred_check_branch
        %274 = sbr.rel (%p272) target = $region40
      $region39: #{tpu_custom_call.1} parent=31 // pred_region
        %p275 = scmp.lt.s32.totalorder %s20, 1
        %s276 = scalar_select %p275, %s20, 1
        %p277 = scmp.lt.s32.totalorder %s22, 0
        %s278 = scalar_select %p277, %s22, 0
        %s279 = sadd.s32 %s278, %s276
        %s280 = scalar_lea.vmem %s1, %s279
      $region40: #{tpu_custom_call.1} parent=31 // pred_fallthru
        _
      // Predicated region
      $region41: #{tpu_custom_call.1} parent=31 // pred_check
        %p281 = pneg %p110
      $region42: #{tpu_custom_call.1} parent=31 // pred_check_branch
        %283 = sbr.rel (%p281) target = $region44
      $region43: #{tpu_custom_call.1} parent=31 // pred_region
        %s284 = smul.u32 8, %s22
        %p285 = scmp.lt.s32.totalorder %s20, 1
        %s286 = scalar_select %p285, %s20, 1
        %p287 = scmp.lt.s32.totalorder %s284, 7
        %s288 = scalar_select %p287, %s284, 7
        %s289 = smul.addr %s286, 8
        %s290 = sadd.s32 %s288, %s289
        %s291 = smul.addr %s290, 4
        %s292 = scalar_lea.vmem %s2, %s291
        %s293 = smul.u32 8, %s22
      $region44: #{tpu_custom_call.1} parent=31 // pred_fallthru
        _
    $region32: #{tpu_custom_call.1} parent=5 // pred_fallthru
      _
    %p294 = scmp.le.s32.totalorder 1, %s13
    %p295 = scmp.lt.s32.totalorder %s13, 9
    %p296 = pnand %p294, %p295
    %p297 = pneg %p296
    // Predicated region
    $region45: #{tpu_custom_call.1} parent=5 // pred_check
      _
    $region46: #{tpu_custom_call.1} parent=5 // pred_check_branch
      %299 = sbr.rel (%p296) target = $region48
    $region47: #{tpu_custom_call.1} parent=5 // pred_region
      %s300 = ssub.s32 %s13, 1
      %s301 = smul.u32 8, %s24
      %p302 = scmp.lt.s32.totalorder %s23, 1
      %s303 = scalar_select %p302, %s23, 1
      %p304 = scmp.lt.s32.totalorder %s301, 31
      %s305 = scalar_select %p304, %s301, 31
      %s306 = smul.addr %s303, 32
      %s307 = sadd.s32 %s305, %s306
      %s308 = smul.addr %s307, 8
      %s309 = scalar_lea.vmem %s0, %s308
      %p310 = pneg %p60
      %p311 = pneg %p57
      %p312 = scmp.lt.s32.totalorder %s23, 1
      %s313 = scalar_select %p312, %s23, 1
      %p314 = scmp.lt.s32.totalorder %s25, 0
      %s315 = scalar_select %p314, %s25, 0
      %s316 = sadd.s32 %s315, %s313
      %s317 = scalar_lea.vmem %s1, %s316
      %p318 = pneg %p88
      %p319 = pneg %p85
      %s320 = smul.u32 8, %s25
      %p321 = scmp.lt.s32.totalorder %s23, 1
      %s322 = scalar_select %p321, %s23, 1
      %p323 = scmp.lt.s32.totalorder %s320, 7
      %s324 = scalar_select %p323, %s320, 7
      %s325 = smul.addr %s322, 8
      %s326 = sadd.s32 %s324, %s325
      %s327 = smul.addr %s326, 4
      %s328 = scalar_lea.vmem %s2, %s327
      %p329 = pneg %p116
      %p330 = pneg %p113
      %p331 = pneg %p137
      %p332 = pneg %p134
      %p333 = pneg %p158
      %p334 = pneg %p155
      %p335 = pneg %p179
      %p336 = pneg %p176
      %p337 = pneg %p200
      %p338 = pneg %p197
      %p339 = pneg %p228
      %p340 = pneg %p225
      %s341 = smul.u32 8, %s24
      %p342 = scmp.lt.s32.totalorder %s23, 1
      %s343 = scalar_select %p342, %s23, 1
      %p344 = scmp.lt.s32.totalorder %s341, 31
      %s345 = scalar_select %p344, %s341, 31
      %s346 = smul.addr %s343, 32
      %s347 = sadd.s32 %s345, %s346
      %s348 = smul.addr %s347, 8
      %s349 = scalar_lea.vmem %s7, %s348
      %s350 = smul.u32 8, %s24
      %p351 = scmp.lt.s32.totalorder %s23, 1
      %s352 = scalar_select %p351, %s23, 1
      %p353 = scmp.lt.s32.totalorder %s350, 31
      %s354 = scalar_select %p353, %s350, 31
      %s355 = smul.addr %s352, 32
      %s356 = sadd.s32 %s354, %s355
      %s357 = smul.addr %s356, 8
      %s358 = scalar_lea.vmem %s0, %s357
      %s359 = smul.u32 8, %s24
      %p360 = scmp.lt.s32.totalorder %s23, 1
      %s361 = scalar_select %p360, %s23, 1
      %p362 = scmp.lt.s32.totalorder %s25, 0
      %s363 = scalar_select %p362, %s25, 0
      %s364 = sadd.s32 %s363, %s361
      %s365 = scalar_lea.vmem %s1, %s364
      %s366 = smul.u32 8, %s25
      %p367 = scmp.lt.s32.totalorder %s23, 1
      %s368 = scalar_select %p367, %s23, 1
      %p369 = scmp.lt.s32.totalorder %s366, 7
      %s370 = scalar_select %p369, %s366, 7
      %s371 = smul.addr %s368, 8
      %s372 = sadd.s32 %s370, %s371
      %s373 = smul.addr %s372, 4
      %s374 = scalar_lea.vmem %s2, %s373
      %s375 = smul.u32 8, %s25
      %s376 = smul.u32 8, %s24
      %p377 = scmp.lt.s32.totalorder %s23, 1
      %s378 = scalar_select %p377, %s23, 1
      %p379 = scmp.lt.s32.totalorder %s376, 31
      %s380 = scalar_select %p379, %s376, 31
      %s381 = smul.addr %s378, 32
      %s382 = sadd.s32 %s380, %s381
      %s383 = smul.addr %s382, 8
      %s384 = scalar_lea.vmem %s7, %s383
      %s385 = smul.u32 8, %s24
      %p387 = scmp.eq.s32.totalorder %s25, 0
      // Predicated region
      $region49: #{tpu_custom_call.1} parent=47 // pred_check
        %p388 = pneg %p387
      $region50: #{tpu_custom_call.1} parent=47 // pred_check_branch
        %390 = sbr.rel (%p388) target = $region52
      $region51: #{tpu_custom_call.1} parent=47 // pred_region
        %vm391 = vcmask 7168
        %392 = vst.msk [vmem:[#allocation2] sm:$0xff] %vm391, -inf
        %393 = vst.msk [vmem:[#allocation2 + $0x8] sm:$0xff] %vm391, -inf
        %394 = vst.msk [vmem:[#allocation2 + $0x10] sm:$0xff] %vm391, -inf
        %395 = vst.msk [vmem:[#allocation2 + $0x18] sm:$0xff] %vm391, -inf
        %396 = vst.msk [vmem:[#allocation2 + $0x20] sm:$0xff] %vm391, -inf
        %397 = vst.msk [vmem:[#allocation2 + $0x28] sm:$0xff] %vm391, -inf
        %398 = vst.msk [vmem:[#allocation2 + $0x30] sm:$0xff] %vm391, -inf
        %399 = vst.msk [vmem:[#allocation2 + $0x38] sm:$0xff] %vm391, -inf
        %400 = vst.msk [vmem:[#allocation3] sm:$0xff] %vm391, 0.0
        %401 = vst.msk [vmem:[#allocation3 + $0x8] sm:$0xff] %vm391, 0.0
        %402 = vst.msk [vmem:[#allocation3 + $0x10] sm:$0xff] %vm391, 0.0
        %403 = vst.msk [vmem:[#allocation3 + $0x18] sm:$0xff] %vm391, 0.0
        %404 = vst.msk [vmem:[#allocation3 + $0x20] sm:$0xff] %vm391, 0.0
        %405 = vst.msk [vmem:[#allocation3 + $0x28] sm:$0xff] %vm391, 0.0
        %406 = vst.msk [vmem:[#allocation3 + $0x30] sm:$0xff] %vm391, 0.0
        %407 = vst.msk [vmem:[#allocation3 + $0x38] sm:$0xff] %vm391, 0.0
        %vm408 = vcmask 15360
        %409 = vst.msk [vmem:[#allocation4] sm:$0xff] %vm408, 0.0
        %410 = vst.msk [vmem:[#allocation4 + $0x8] sm:$0xff] %vm408, 0.0
        %411 = vst.msk [vmem:[#allocation4 + $0x10] sm:$0xff] %vm408, 0.0
        %412 = vst.msk [vmem:[#allocation4 + $0x18] sm:$0xff] %vm408, 0.0
        %413 = vst.msk [vmem:[#allocation4 + $0x20] sm:$0xff] %vm408, 0.0
        %414 = vst.msk [vmem:[#allocation4 + $0x28] sm:$0xff] %vm408, 0.0
        %415 = vst.msk [vmem:[#allocation4 + $0x30] sm:$0xff] %vm408, 0.0
        %416 = vst.msk [vmem:[#allocation4 + $0x38] sm:$0xff] %vm408, 0.0
        %v417 = vld [vmem:[%s358] sm:$0xff]
        %v418 = vld [vmem:[%s358 + $0x8] sm:$0xff]
        %v419 = vld [vmem:[%s358 + $0x10] sm:$0xff]
        %v420 = vld [vmem:[%s358 + $0x18] sm:$0xff]
        %v421 = vld [vmem:[%s358 + $0x20] sm:$0xff]
        %v422 = vld [vmem:[%s358 + $0x28] sm:$0xff]
        %v423 = vld [vmem:[%s358 + $0x30] sm:$0xff]
        %v424 = vld [vmem:[%s358 + $0x38] sm:$0xff]
        %v425 = vpack.c.bf16 %v418, %v417
        %v426 = vpack.c.bf16 %v420, %v419
        %v427 = vpack.c.bf16 %v422, %v421
        %v428 = vpack.c.bf16 %v424, %v423
        %v429 = vld [vmem:[%s3] sm:$0x3]
        %v430 = vld [vmem:[%s4] sm:$0x1]
        %v432 = vperm.slane %v430, 0
        %vm434 = vcmask 31744
        %v436 = vsel %vm434, %v425, 0
        %v439 = vsel %vm434, %v426, 0
        %v442 = vsel %vm434, %v427, 0
        %v445 = vsel %vm434, %v428, 0
        %vm447 = vcmask 1041408
        %v449 = vsel %vm447, %v429, 0
        %451 = vmatpush.bf16.msra.mxu0 0
        %452 = vmatpush.bf16.msra.mxu0 0
        %453 = vmatpush.bf16.msra.mxu0 0
        %454 = vmatpush.bf16.msra.mxu0 0
        %455 = vmatpush.bf16.msra.mxu0 0
        %456 = vmatpush.bf16.msra.mxu0 0
        %457 = vmatpush.bf16.msra.mxu0 0
        %458 = vmatpush.bf16.msra.mxu0 %v449
        %459 = vmatmul.bf16.gmra.mxu0 %v436
        %v460 = vpop.f32.mrf.mxu0
        %v461 = vadd.f32 %v432, %v460
        %v462 = vpop.f32.mrf.mxu0
        %v463 = vadd.f32 %v432, %v462
        %464 = vmatmul.bf16.gmra.mxu0 %v439
        %v465 = vpop.f32.mrf.mxu0
        %v466 = vadd.f32 %v432, %v465
        %v467 = vpop.f32.mrf.mxu0
        %v468 = vadd.f32 %v432, %v467
        %469 = vmatmul.bf16.gmra.mxu0 %v442
        %v470 = vpop.f32.mrf.mxu0
        %v471 = vadd.f32 %v432, %v470
        %v472 = vpop.f32.mrf.mxu0
        %v473 = vadd.f32 %v432, %v472
        %474 = vmatmul.bf16.gmra.mxu0 %v445
        %v475 = vpop.f32.mrf.mxu0
        %v476 = vadd.f32 %v432, %v475
        %v477 = vpop.f32.mrf.mxu0
        %v478 = vadd.f32 %v432, %v477
        %479 = vdwg.mxu0
        %v480 = vpack.c.bf16 %v461, %v461
        %v481 = vpack.c.bf16 %v463, %v463
        %v482 = vpack.c.bf16 %v466, %v466
        %v483 = vpack.c.bf16 %v468, %v468
        %v484 = vpack.c.bf16 %v471, %v471
        %v485 = vpack.c.bf16 %v473, %v473
        %v486 = vpack.c.bf16 %v476, %v476
        %v487 = vpack.c.bf16 %v478, %v478
        %vm488 = vcmask 11264
        %489 = vst.msk [vmem:[#allocation5] sm:$0xf] %vm488, %v480
        %490 = vst.msk [vmem:[#allocation5 + $0x4] sm:$0xf] %vm488, %v481
        %491 = vst.msk [vmem:[#allocation5 + $0x8] sm:$0xf] %vm488, %v482
        %492 = vst.msk [vmem:[#allocation5 + $0xc] sm:$0xf] %vm488, %v483
        %493 = vst.msk [vmem:[#allocation5 + $0x10] sm:$0xf] %vm488, %v484
        %494 = vst.msk [vmem:[#allocation5 + $0x14] sm:$0xf] %vm488, %v485
        %495 = vst.msk [vmem:[#allocation5 + $0x18] sm:$0xf] %vm488, %v486
        %496 = vst.msk [vmem:[#allocation5 + $0x1c] sm:$0xf] %vm488, %v487
      $region52: #{tpu_custom_call.1} parent=47 // pred_fallthru
        _
      %v497 = vld [vmem:[#allocation5] sm:$0xf]
      %v498 = vld [vmem:[#allocation5 + $0x4] sm:$0xf]
      %v499 = vld [vmem:[#allocation5 + $0x8] sm:$0xf]
      %v500 = vld [vmem:[#allocation5 + $0xc] sm:$0xf]
      %v501 = vld [vmem:[#allocation5 + $0x10] sm:$0xf]
      %v502 = vld [vmem:[#allocation5 + $0x14] sm:$0xf]
      %v503 = vld [vmem:[#allocation5 + $0x18] sm:$0xf]
      %v504 = vld [vmem:[#allocation5 + $0x1c] sm:$0xf]
      %v505 = vld [vmem:[%s365] sm:$0x1]
      %v514 = vunpack.c.l.b16 %v497
      %v515 = vunpack.c.l.b16 %v498
      %v516 = vunpack.c.l.b16 %v499
      %v517 = vunpack.c.l.b16 %v500
      %v518 = vunpack.c.l.b16 %v501
      %v519 = vunpack.c.l.b16 %v502
      %v520 = vunpack.c.l.b16 %v503
      %v521 = vunpack.c.l.b16 %v504
      %v522 = vpack.c.b16 %v515, %v514
      %v523 = vpack.c.b16 %v517, %v516
      %v524 = vpack.c.b16 %v519, %v518
      %v525 = vpack.c.b16 %v521, %v520
      %vm526 = vcmask 15360
      %v528 = vsel %vm526, %v522, 0
      %v531 = vsel %vm526, %v523, 0
      %v534 = vsel %vm526, %v524, 0
      %v537 = vsel %vm526, %v525, 0
      %vm539 = vcmask 1040384
      %v541 = vsel %vm539, %v505, 0
      %543 = vmatpush.bf16.msra.mxu0 0
      %544 = vmatpush.bf16.msra.mxu0 0
      %545 = vmatpush.bf16.msra.mxu0 0
      %546 = vmatpush.bf16.msra.mxu0 0
      %547 = vmatpush.bf16.msra.mxu0 0
      %548 = vmatpush.bf16.msra.mxu0 0
      %549 = vmatpush.bf16.msra.mxu0 0
      %550 = vmatpush.bf16.msra.mxu0 %v541
      %551 = vmatmul.bf16.gmra.mxu0 %v528
      %v552 = vpop.f32.mrf.mxu0
      %v553 = vadd.f32 0.0, %v552
      %v554 = vpop.f32.mrf.mxu0
      %v555 = vadd.f32 0.0, %v554
      %556 = vmatmul.bf16.gmra.mxu0 %v531
      %v557 = vpop.f32.mrf.mxu0
      %v558 = vadd.f32 0.0, %v557
      %v559 = vpop.f32.mrf.mxu0
      %v560 = vadd.f32 0.0, %v559
      %561 = vmatmul.bf16.gmra.mxu0 %v534
      %v562 = vpop.f32.mrf.mxu0
      %v563 = vadd.f32 0.0, %v562
      %v564 = vpop.f32.mrf.mxu0
      %v565 = vadd.f32 0.0, %v564
      %566 = vmatmul.bf16.gmra.mxu0 %v537
      %v567 = vpop.f32.mrf.mxu0
      %v568 = vadd.f32 0.0, %v567
      %v569 = vpop.f32.mrf.mxu0
      %v570 = vadd.f32 0.0, %v569
      %571 = vdwg.mxu0
      %v572 = vld [vmem:[#allocation2] sm:$0xff]
      %v573 = vld [vmem:[#allocation2 + $0x8] sm:$0xff]
      %v574 = vld [vmem:[#allocation2 + $0x10] sm:$0xff]
      %v575 = vld [vmem:[#allocation2 + $0x18] sm:$0xff]
      %v576 = vld [vmem:[#allocation2 + $0x20] sm:$0xff]
      %v577 = vld [vmem:[#allocation2 + $0x28] sm:$0xff]
      %v578 = vld [vmem:[#allocation2 + $0x30] sm:$0xff]
      %v579 = vld [vmem:[#allocation2 + $0x38] sm:$0xff]
      %vm580 = vcmask 523264
      %v581 = vsel %vm580, %v553, -inf
      %582 = vmax.xlane.f32.xlu0 %v581
      %v583 = vpop.xlane.xlu0 %582
      %v584 = vsel %vm580, %v555, -inf
      %585 = vmax.xlane.f32.xlu0 %v584
      %v586 = vpop.xlane.xlu0 %585
      %v587 = vsel %vm580, %v558, -inf
      %588 = vmax.xlane.f32.xlu0 %v587
      %v589 = vpop.xlane.xlu0 %588
      %v590 = vsel %vm580, %v560, -inf
      %591 = vmax.xlane.f32.xlu0 %v590
      %v592 = vpop.xlane.xlu0 %591
      %v593 = vsel %vm580, %v563, -inf
      %594 = vmax.xlane.f32.xlu0 %v593
      %v595 = vpop.xlane.xlu0 %594
      %v596 = vsel %vm580, %v565, -inf
      %597 = vmax.xlane.f32.xlu0 %v596
      %v598 = vpop.xlane.xlu0 %597
      %v599 = vsel %vm580, %v568, -inf
      %600 = vmax.xlane.f32.xlu0 %v599
      %v601 = vpop.xlane.xlu0 %600
      %v602 = vsel %vm580, %v570, -inf
      %603 = vmax.xlane.f32.xlu0 %v602
      %v604 = vpop.xlane.xlu0 %603
      %v605 = vmax.f32 %v572, %v583
      %v606 = vmax.f32 %v573, %v586
      %v607 = vmax.f32 %v574, %v589
      %v608 = vmax.f32 %v575, %v592
      %v609 = vmax.f32 %v576, %v595
      %v610 = vmax.f32 %v577, %v598
      %v611 = vmax.f32 %v578, %v601
      %v612 = vmax.f32 %v579, %v604
      %v613 = vsub.f32 %v572, %v605
      %v614 = vsub.f32 %v573, %v606
      %v615 = vsub.f32 %v574, %v607
      %v616 = vsub.f32 %v575, %v608
      %v617 = vsub.f32 %v576, %v609
      %v618 = vsub.f32 %v577, %v610
      %v619 = vsub.f32 %v578, %v611
      %v620 = vsub.f32 %v579, %v612
      %v621 = vmul.f32 %v613, 1.442695
      %v622 = vpow.pop %v621
      %v623 = vmul.f32 %v614, 1.442695
      %v624 = vpow.pop %v623
      %v625 = vmul.f32 %v615, 1.442695
      %v626 = vpow.pop %v625
      %v627 = vmul.f32 %v616, 1.442695
      %v628 = vpow.pop %v627
      %v629 = vmul.f32 %v617, 1.442695
      %v630 = vpow.pop %v629
      %v631 = vmul.f32 %v618, 1.442695
      %v632 = vpow.pop %v631
      %v633 = vmul.f32 %v619, 1.442695
      %v634 = vpow.pop %v633
      %v635 = vmul.f32 %v620, 1.442695
      %v636 = vpow.pop %v635
      %638 = vset.pattern.permute.xlu0 0
      %639 = vperm.xlu0 %638, %v605
      %v640 = vpop.permute.xlu0 %639
      %643 = vset.pattern.permute.xlu0 0
      %644 = vperm.xlu0 %643, %v606
      %v645 = vpop.permute.xlu0 %644
      %648 = vset.pattern.permute.xlu0 0
      %649 = vperm.xlu0 %648, %v607
      %v650 = vpop.permute.xlu0 %649
      %653 = vset.pattern.permute.xlu0 0
      %654 = vperm.xlu0 %653, %v608
      %v655 = vpop.permute.xlu0 %654
      %658 = vset.pattern.permute.xlu0 0
      %659 = vperm.xlu0 %658, %v609
      %v660 = vpop.permute.xlu0 %659
      %663 = vset.pattern.permute.xlu0 0
      %664 = vperm.xlu0 %663, %v610
      %v665 = vpop.permute.xlu0 %664
      %668 = vset.pattern.permute.xlu0 0
      %669 = vperm.xlu0 %668, %v611
      %v670 = vpop.permute.xlu0 %669
      %673 = vset.pattern.permute.xlu0 0
      %674 = vperm.xlu0 %673, %v612
      %v675 = vpop.permute.xlu0 %674
      %v677 = vsub.f32 %v553, %v640
      %v678 = vsub.f32 %v555, %v645
      %v679 = vsub.f32 %v558, %v650
      %v680 = vsub.f32 %v560, %v655
      %v681 = vsub.f32 %v563, %v660
      %v682 = vsub.f32 %v565, %v665
      %v683 = vsub.f32 %v568, %v670
      %v684 = vsub.f32 %v570, %v675
      %v685 = vmul.f32 %v677, 1.442695
      %v686 = vpow.pop %v685
      %v687 = vmul.f32 %v678, 1.442695
      %v688 = vpow.pop %v687
      %v689 = vmul.f32 %v679, 1.442695
      %v690 = vpow.pop %v689
      %v691 = vmul.f32 %v680, 1.442695
      %v692 = vpow.pop %v691
      %v693 = vmul.f32 %v681, 1.442695
      %v694 = vpow.pop %v693
      %v695 = vmul.f32 %v682, 1.442695
      %v696 = vpow.pop %v695
      %v697 = vmul.f32 %v683, 1.442695
      %v698 = vpow.pop %v697
      %v699 = vmul.f32 %v684, 1.442695
      %v700 = vpow.pop %v699
      %v701 = vpack.c.bf16 %v688, %v686
      %v702 = vpack.c.bf16 %v692, %v690
      %v703 = vpack.c.bf16 %v696, %v694
      %v704 = vpack.c.bf16 %v700, %v698
      %v705 = vld [vmem:[#allocation3] sm:$0xff]
      %v706 = vld [vmem:[#allocation3 + $0x8] sm:$0xff]
      %v707 = vld [vmem:[#allocation3 + $0x10] sm:$0xff]
      %v708 = vld [vmem:[#allocation3 + $0x18] sm:$0xff]
      %v709 = vld [vmem:[#allocation3 + $0x20] sm:$0xff]
      %v710 = vld [vmem:[#allocation3 + $0x28] sm:$0xff]
      %v711 = vld [vmem:[#allocation3 + $0x30] sm:$0xff]
      %v712 = vld [vmem:[#allocation3 + $0x38] sm:$0xff]
      %v713 = vmul.f32 %v622, %v705
      %v714 = vmul.f32 %v624, %v706
      %v715 = vmul.f32 %v626, %v707
      %v716 = vmul.f32 %v628, %v708
      %v717 = vmul.f32 %v630, %v709
      %v718 = vmul.f32 %v632, %v710
      %v719 = vmul.f32 %v634, %v711
      %v720 = vmul.f32 %v636, %v712
      %v721 = vunpack.c.l.bf16 %v701
      %v722 = vunpack.c.h.bf16 %v701
      %v723 = vunpack.c.l.bf16 %v702
      %v724 = vunpack.c.h.bf16 %v702
      %v725 = vunpack.c.l.bf16 %v703
      %v726 = vunpack.c.h.bf16 %v703
      %v727 = vunpack.c.l.bf16 %v704
      %v728 = vunpack.c.h.bf16 %v704
      %v729 = vsel %vm580, %v721, 0.0
      %730 = vadd.xlane.f32.xlu0 %v729
      %v731 = vpop.xlane.xlu0 %730
      %v732 = vsel %vm580, %v722, 0.0
      %733 = vadd.xlane.f32.xlu0 %v732
      %v734 = vpop.xlane.xlu0 %733
      %v735 = vsel %vm580, %v723, 0.0
      %736 = vadd.xlane.f32.xlu0 %v735
      %v737 = vpop.xlane.xlu0 %736
      %v738 = vsel %vm580, %v724, 0.0
      %739 = vadd.xlane.f32.xlu0 %v738
      %v740 = vpop.xlane.xlu0 %739
      %v741 = vsel %vm580, %v725, 0.0
      %742 = vadd.xlane.f32.xlu0 %v741
      %v743 = vpop.xlane.xlu0 %742
      %v744 = vsel %vm580, %v726, 0.0
      %745 = vadd.xlane.f32.xlu0 %v744
      %v746 = vpop.xlane.xlu0 %745
      %v747 = vsel %vm580, %v727, 0.0
      %748 = vadd.xlane.f32.xlu0 %v747
      %v749 = vpop.xlane.xlu0 %748
      %v750 = vsel %vm580, %v728, 0.0
      %751 = vadd.xlane.f32.xlu0 %v750
      %v752 = vpop.xlane.xlu0 %751
      %v753 = vadd.f32 %v713, %v731
      %v754 = vadd.f32 %v714, %v734
      %v755 = vadd.f32 %v715, %v737
      %v756 = vadd.f32 %v716, %v740
      %v757 = vadd.f32 %v717, %v743
      %v758 = vadd.f32 %v718, %v746
      %v759 = vadd.f32 %v719, %v749
      %v760 = vadd.f32 %v720, %v752
      %vm761 = vcmask 7168
      %762 = vst.msk [vmem:[#allocation3] sm:$0xff] %vm761, %v753
      %763 = vst.msk [vmem:[#allocation3 + $0x8] sm:$0xff] %vm761, %v754
      %764 = vst.msk [vmem:[#allocation3 + $0x10] sm:$0xff] %vm761, %v755
      %765 = vst.msk [vmem:[#allocation3 + $0x18] sm:$0xff] %vm761, %v756
      %766 = vst.msk [vmem:[#allocation3 + $0x20] sm:$0xff] %vm761, %v757
      %767 = vst.msk [vmem:[#allocation3 + $0x28] sm:$0xff] %vm761, %v758
      %768 = vst.msk [vmem:[#allocation3 + $0x30] sm:$0xff] %vm761, %v759
      %769 = vst.msk [vmem:[#allocation3 + $0x38] sm:$0xff] %vm761, %v760
      %v770 = vld [vmem:[#allocation4] sm:$0xff]
      %v771 = vld [vmem:[#allocation4 + $0x8] sm:$0xff]
      %v772 = vld [vmem:[#allocation4 + $0x10] sm:$0xff]
      %v773 = vld [vmem:[#allocation4 + $0x18] sm:$0xff]
      %v774 = vld [vmem:[#allocation4 + $0x20] sm:$0xff]
      %v775 = vld [vmem:[#allocation4 + $0x28] sm:$0xff]
      %v776 = vld [vmem:[#allocation4 + $0x30] sm:$0xff]
      %v777 = vld [vmem:[#allocation4 + $0x38] sm:$0xff]
      %779 = vset.pattern.permute.xlu0 0
      %780 = vperm.xlu0 %779, %v622
      %v781 = vpop.permute.xlu0 %780
      %784 = vset.pattern.permute.xlu0 0
      %785 = vperm.xlu0 %784, %v624
      %v786 = vpop.permute.xlu0 %785
      %789 = vset.pattern.permute.xlu0 0
      %790 = vperm.xlu0 %789, %v626
      %v791 = vpop.permute.xlu0 %790
      %794 = vset.pattern.permute.xlu0 0
      %795 = vperm.xlu0 %794, %v628
      %v796 = vpop.permute.xlu0 %795
      %799 = vset.pattern.permute.xlu0 0
      %800 = vperm.xlu0 %799, %v630
      %v801 = vpop.permute.xlu0 %800
      %804 = vset.pattern.permute.xlu0 0
      %805 = vperm.xlu0 %804, %v632
      %v806 = vpop.permute.xlu0 %805
      %809 = vset.pattern.permute.xlu0 0
      %810 = vperm.xlu0 %809, %v634
      %v811 = vpop.permute.xlu0 %810
      %814 = vset.pattern.permute.xlu0 0
      %815 = vperm.xlu0 %814, %v636
      %v816 = vpop.permute.xlu0 %815
      %v818 = vmul.f32 %v781, %v770
      %v819 = vmul.f32 %v786, %v771
      %v820 = vmul.f32 %v791, %v772
      %v821 = vmul.f32 %v796, %v773
      %v822 = vmul.f32 %v801, %v774
      %v823 = vmul.f32 %v806, %v775
      %v824 = vmul.f32 %v811, %v776
      %v825 = vmul.f32 %v816, %v777
      %v826 = vld [vmem:[%s374] sm:$0xf]
      %v827 = vld [vmem:[%s374 + $0x4] sm:$0xf]
      %v828 = vld [vmem:[%s374 + $0x8] sm:$0xf]
      %v829 = vld [vmem:[%s374 + $0xc] sm:$0xf]
      %v830 = vld [vmem:[%s374 + $0x10] sm:$0xf]
      %v831 = vld [vmem:[%s374 + $0x14] sm:$0xf]
      %v832 = vld [vmem:[%s374 + $0x18] sm:$0xf]
      %v833 = vld [vmem:[%s374 + $0x1c] sm:$0xf]
      %v842 = vunpack.c.l.b16 %v826
      %v843 = vunpack.c.l.b16 %v827
      %v844 = vunpack.c.l.b16 %v828
      %v845 = vunpack.c.l.b16 %v829
      %v846 = vunpack.c.l.b16 %v830
      %v847 = vunpack.c.l.b16 %v831
      %v848 = vunpack.c.l.b16 %v832
      %v849 = vunpack.c.l.b16 %v833
      %v850 = vpack.c.b16 %v843, %v842
      %v851 = vpack.c.b16 %v845, %v844
      %v852 = vpack.c.b16 %v847, %v846
      %v853 = vpack.c.b16 %v849, %v848
      %v859 = vsel %vm580, %v701, 0
      %v862 = vsel %vm580, %v702, 0
      %v865 = vsel %vm580, %v703, 0
      %v868 = vsel %vm580, %v704, 0
      %870 = vmatpush.bf16.msra.mxu0 0
      %871 = vmatpush.bf16.msra.mxu0 0
      %872 = vmatpush.bf16.msra.mxu0 0
      %873 = vmatpush.bf16.msra.mxu0 0
      %874 = vmatpush.bf16.msra.mxu0 %v853
      %875 = vmatpush.bf16.msra.mxu0 %v852
      %876 = vmatpush.bf16.msra.mxu0 %v851
      %877 = vmatpush.bf16.msra.mxu0 %v850
      %878 = vmatmul.bf16.gmra.mxu0 %v859
      %v879 = vpop.f32.mrf.mxu0
      %v880 = vadd.f32 0.0, %v879
      %v881 = vpop.f32.mrf.mxu0
      %v882 = vadd.f32 0.0, %v881
      %883 = vmatmul.bf16.gmra.mxu0 %v862
      %v884 = vpop.f32.mrf.mxu0
      %v885 = vadd.f32 0.0, %v884
      %v886 = vpop.f32.mrf.mxu0
      %v887 = vadd.f32 0.0, %v886
      %888 = vmatmul.bf16.gmra.mxu0 %v865
      %v889 = vpop.f32.mrf.mxu0
      %v890 = vadd.f32 0.0, %v889
      %v891 = vpop.f32.mrf.mxu0
      %v892 = vadd.f32 0.0, %v891
      %893 = vmatmul.bf16.gmra.mxu0 %v868
      %v894 = vpop.f32.mrf.mxu0
      %v895 = vadd.f32 0.0, %v894
      %v896 = vpop.f32.mrf.mxu0
      %v897 = vadd.f32 0.0, %v896
      %898 = vdwg.mxu0
      %v899 = vadd.f32 %v818, %v880
      %v900 = vadd.f32 %v819, %v882
      %v901 = vadd.f32 %v820, %v885
      %v902 = vadd.f32 %v821, %v887
      %v903 = vadd.f32 %v822, %v890
      %v904 = vadd.f32 %v823, %v892
      %v905 = vadd.f32 %v824, %v895
      %v906 = vadd.f32 %v825, %v897
      %907 = vst.msk [vmem:[#allocation4] sm:$0xff] %vm526, %v899
      %908 = vst.msk [vmem:[#allocation4 + $0x8] sm:$0xff] %vm526, %v900
      %909 = vst.msk [vmem:[#allocation4 + $0x10] sm:$0xff] %vm526, %v901
      %910 = vst.msk [vmem:[#allocation4 + $0x18] sm:$0xff] %vm526, %v902
      %911 = vst.msk [vmem:[#allocation4 + $0x20] sm:$0xff] %vm526, %v903
      %912 = vst.msk [vmem:[#allocation4 + $0x28] sm:$0xff] %vm526, %v904
      %913 = vst.msk [vmem:[#allocation4 + $0x30] sm:$0xff] %vm526, %v905
      %914 = vst.msk [vmem:[#allocation4 + $0x38] sm:$0xff] %vm526, %v906
      %915 = vst.msk [vmem:[#allocation2] sm:$0xff] %vm761, %v605
      %916 = vst.msk [vmem:[#allocation2 + $0x8] sm:$0xff] %vm761, %v606
      %917 = vst.msk [vmem:[#allocation2 + $0x10] sm:$0xff] %vm761, %v607
      %918 = vst.msk [vmem:[#allocation2 + $0x18] sm:$0xff] %vm761, %v608
      %919 = vst.msk [vmem:[#allocation2 + $0x20] sm:$0xff] %vm761, %v609
      %920 = vst.msk [vmem:[#allocation2 + $0x28] sm:$0xff] %vm761, %v610
      %921 = vst.msk [vmem:[#allocation2 + $0x30] sm:$0xff] %vm761, %v611
      %922 = vst.msk [vmem:[#allocation2 + $0x38] sm:$0xff] %vm761, %v612
      // Predicated region
      $region53: #{tpu_custom_call.1} parent=47 // pred_check
        %p923 = pneg %p387
      $region54: #{tpu_custom_call.1} parent=47 // pred_check_branch
        %925 = sbr.rel (%p923) target = $region56
      $region55: #{tpu_custom_call.1} parent=47 // pred_region
        %v926 = vld [vmem:[#allocation4] sm:$0xff]
        %v927 = vld [vmem:[#allocation4 + $0x8] sm:$0xff]
        %v928 = vld [vmem:[#allocation4 + $0x10] sm:$0xff]
        %v929 = vld [vmem:[#allocation4 + $0x18] sm:$0xff]
        %v930 = vld [vmem:[#allocation4 + $0x20] sm:$0xff]
        %v931 = vld [vmem:[#allocation4 + $0x28] sm:$0xff]
        %v932 = vld [vmem:[#allocation4 + $0x30] sm:$0xff]
        %v933 = vld [vmem:[#allocation4 + $0x38] sm:$0xff]
        %v934 = vld [vmem:[#allocation3] sm:$0xff]
        %v935 = vld [vmem:[#allocation3 + $0x8] sm:$0xff]
        %v936 = vld [vmem:[#allocation3 + $0x10] sm:$0xff]
        %v937 = vld [vmem:[#allocation3 + $0x18] sm:$0xff]
        %v938 = vld [vmem:[#allocation3 + $0x20] sm:$0xff]
        %v939 = vld [vmem:[#allocation3 + $0x28] sm:$0xff]
        %v940 = vld [vmem:[#allocation3 + $0x30] sm:$0xff]
        %v941 = vld [vmem:[#allocation3 + $0x38] sm:$0xff]
        %v942 = vrcp.pop %v934
        %v943 = vrcp.pop %v935
        %v944 = vrcp.pop %v936
        %v945 = vrcp.pop %v937
        %v946 = vrcp.pop %v938
        %v947 = vrcp.pop %v939
        %v948 = vrcp.pop %v940
        %v949 = vrcp.pop %v941
        %951 = vset.pattern.permute.xlu0 0
        %952 = vperm.xlu0 %951, %v942
        %v953 = vpop.permute.xlu0 %952
        %956 = vset.pattern.permute.xlu0 0
        %957 = vperm.xlu0 %956, %v943
        %v958 = vpop.permute.xlu0 %957
        %961 = vset.pattern.permute.xlu0 0
        %962 = vperm.xlu0 %961, %v944
        %v963 = vpop.permute.xlu0 %962
        %966 = vset.pattern.permute.xlu0 0
        %967 = vperm.xlu0 %966, %v945
        %v968 = vpop.permute.xlu0 %967
        %971 = vset.pattern.permute.xlu0 0
        %972 = vperm.xlu0 %971, %v946
        %v973 = vpop.permute.xlu0 %972
        %976 = vset.pattern.permute.xlu0 0
        %977 = vperm.xlu0 %976, %v947
        %v978 = vpop.permute.xlu0 %977
        %981 = vset.pattern.permute.xlu0 0
        %982 = vperm.xlu0 %981, %v948
        %v983 = vpop.permute.xlu0 %982
        %986 = vset.pattern.permute.xlu0 0
        %987 = vperm.xlu0 %986, %v949
        %v988 = vpop.permute.xlu0 %987
        %v990 = vmul.f32 %v926, %v953
        %v991 = vmul.f32 %v927, %v958
        %v992 = vmul.f32 %v928, %v963
        %v993 = vmul.f32 %v929, %v968
        %v994 = vmul.f32 %v930, %v973
        %v995 = vmul.f32 %v931, %v978
        %v996 = vmul.f32 %v932, %v983
        %v997 = vmul.f32 %v933, %v988
        %v998 = vpack.c.bf16 %v991, %v990
        %v999 = vpack.c.bf16 %v993, %v992
        %v1000 = vpack.c.bf16 %v995, %v994
        %v1001 = vpack.c.bf16 %v997, %v996
        %v1002 = vld [vmem:[%s5] sm:$0x1]
        %v1003 = vld [vmem:[%s6] sm:$0x1]
        %v1005 = vperm.slane %v1003, 0
        %v1008 = vsel %vm526, %v998, 0
        %v1011 = vsel %vm526, %v999, 0
        %v1014 = vsel %vm526, %v1000, 0
        %v1017 = vsel %vm526, %v1001, 0
        %v1020 = vsel %vm539, %v1002, 0
        %1022 = vmatpush.bf16.msra.mxu0 0
        %1023 = vmatpush.bf16.msra.mxu0 0
        %1024 = vmatpush.bf16.msra.mxu0 0
        %1025 = vmatpush.bf16.msra.mxu0 0
        %1026 = vmatpush.bf16.msra.mxu0 0
        %1027 = vmatpush.bf16.msra.mxu0 0
        %1028 = vmatpush.bf16.msra.mxu0 0
        %1029 = vmatpush.bf16.msra.mxu0 %v1020
        %1030 = vmatmul.bf16.gmra.mxu0 %v1008
        %v1031 = vpop.f32.mrf.mxu0
        %v1032 = vadd.f32 %v1005, %v1031
        %v1033 = vpop.f32.mrf.mxu0
        %v1034 = vadd.f32 %v1005, %v1033
        %1035 = vmatmul.bf16.gmra.mxu0 %v1011
        %v1036 = vpop.f32.mrf.mxu0
        %v1037 = vadd.f32 %v1005, %v1036
        %v1038 = vpop.f32.mrf.mxu0
        %v1039 = vadd.f32 %v1005, %v1038
        %1040 = vmatmul.bf16.gmra.mxu0 %v1014
        %v1041 = vpop.f32.mrf.mxu0
        %v1042 = vadd.f32 %v1005, %v1041
        %v1043 = vpop.f32.mrf.mxu0
        %v1044 = vadd.f32 %v1005, %v1043
        %1045 = vmatmul.bf16.gmra.mxu0 %v1017
        %v1046 = vpop.f32.mrf.mxu0
        %v1047 = vadd.f32 %v1005, %v1046
        %v1048 = vpop.f32.mrf.mxu0
        %v1049 = vadd.f32 %v1005, %v1048
        %1050 = vdwg.mxu0
        %v1051 = vld [vmem:[%s358] sm:$0xff]
        %v1052 = vld [vmem:[%s358 + $0x8] sm:$0xff]
        %v1053 = vld [vmem:[%s358 + $0x10] sm:$0xff]
        %v1054 = vld [vmem:[%s358 + $0x18] sm:$0xff]
        %v1055 = vld [vmem:[%s358 + $0x20] sm:$0xff]
        %v1056 = vld [vmem:[%s358 + $0x28] sm:$0xff]
        %v1057 = vld [vmem:[%s358 + $0x30] sm:$0xff]
        %v1058 = vld [vmem:[%s358 + $0x38] sm:$0xff]
        %v1059 = vadd.f32 %v1032, %v1051
        %v1060 = vadd.f32 %v1034, %v1052
        %v1061 = vadd.f32 %v1037, %v1053
        %v1062 = vadd.f32 %v1039, %v1054
        %v1063 = vadd.f32 %v1042, %v1055
        %v1064 = vadd.f32 %v1044, %v1056
        %v1065 = vadd.f32 %v1047, %v1057
        %v1066 = vadd.f32 %v1049, %v1058
        %vm1067 = vcmask 31744
        %1068 = vst.msk [vmem:[%s384] sm:$0xff] %vm1067, %v1059
        %1069 = vst.msk [vmem:[%s384 + $0x8] sm:$0xff] %vm1067, %v1060
        %1070 = vst.msk [vmem:[%s384 + $0x10] sm:$0xff] %vm1067, %v1061
        %1071 = vst.msk [vmem:[%s384 + $0x18] sm:$0xff] %vm1067, %v1062
        %1072 = vst.msk [vmem:[%s384 + $0x20] sm:$0xff] %vm1067, %v1063
        %1073 = vst.msk [vmem:[%s384 + $0x28] sm:$0xff] %vm1067, %v1064
        %1074 = vst.msk [vmem:[%s384 + $0x30] sm:$0xff] %vm1067, %v1065
        %1075 = vst.msk [vmem:[%s384 + $0x38] sm:$0xff] %vm1067, %v1066
      $region56: #{tpu_custom_call.1} parent=47 // pred_fallthru
        _
      %s1076 = smul.u32 8, %s24
      %p1077 = scmp.lt.s32.totalorder %s23, 1
      %s1078 = scalar_select %p1077, %s23, 1
      %p1079 = scmp.lt.s32.totalorder %s1076, 31
      %s1080 = scalar_select %p1079, %s1076, 31
      %s1081 = smul.addr %s1078, 32
      %s1082 = sadd.s32 %s1080, %s1081
      %s1083 = smul.addr %s1082, 8
      %s1084 = scalar_lea.vmem %s7, %s1083
      // Predicated region
      $region57: #{tpu_custom_call.1} parent=47 // pred_check
        %p1085 = pneg %p225
      $region58: #{tpu_custom_call.1} parent=47 // pred_check_branch
        %1087 = sbr.rel (%p1085) target = $region60
      $region59: #{tpu_custom_call.1} parent=47 // pred_region
        %s1088 = smul.u32 8, %s24
      $region60: #{tpu_custom_call.1} parent=47 // pred_fallthru
        _
    $region48: #{tpu_custom_call.1} parent=5 // pred_fallthru
      _
    %p1089 = scmp.le.s32.totalorder 2, %s13
    // Predicated region
    $region61: #{tpu_custom_call.1} parent=5 // pred_check
      %p1090 = pneg %p1089
    $region62: #{tpu_custom_call.1} parent=5 // pred_check_branch
      %1092 = sbr.rel (%p1090) target = $region64
    $region63: #{tpu_custom_call.1} parent=5 // pred_region
      %s1093 = ssub.s32 %s13, 2
      // Predicated region
      $region65: #{tpu_custom_call.1} parent=63 // pred_check
        %p1094 = pneg %p231
      $region66: #{tpu_custom_call.1} parent=63 // pred_check_branch
        %1096 = sbr.rel (%p1094) target = $region68
      $region67: #{tpu_custom_call.1} parent=63 // pred_region
        %s1097 = smul.u32 8, %s27
        %p1098 = scmp.lt.s32.totalorder %s26, 1
        %s1099 = scalar_select %p1098, %s26, 1
        %p1100 = scmp.lt.s32.totalorder %s1097, 31
        %s1101 = scalar_select %p1100, %s1097, 31
        %s1102 = smul.addr %s1099, 32
        %s1103 = sadd.s32 %s1101, %s1102
        %s1104 = smul.addr %s1103, 8
        %s1105 = scalar_lea.vmem %s7, %s1104
      $region68: #{tpu_custom_call.1} parent=63 // pred_fallthru
        _
    $region64: #{tpu_custom_call.1} parent=5 // pred_fallthru
      _
  $region6: #{tpu_custom_call.1} parent=0 // loop_footer
    %s17 = sadd.s32 1, %s13
  $region7: #{tpu_custom_call.1} parent=0 // loop_footer_branch
    %12 = sbr.rel target = $region3
  $region8: #{tpu_custom_call.1} parent=0 // loop_exit
    _

</llo_original>
